<compile_context>
chip_gen: v5e
topology: v5e:2x2
jax: 0.10.0
libtpu: 0.0.40
codegen_flags: <defaults>
</compile_context>

<pallas_src>
import jax
import jax.numpy as jnp
from jax import lax
from jax.experimental import pallas as pl
from jax.experimental.pallas import tpu as pltpu


def _gradient_loss_kernel(p_ref, t_ref, out_ref):
    # p_ref/t_ref: (TB, H, W) blocks; out_ref: (1, 8, 128) per-block partials.
    p = p_ref[...].astype(jnp.float32)
    t = t_ref[...].astype(jnp.float32)

    # Linearity: grad(p) - grad(t) == grad(p - t)  (exact in f32).
    d = p - t
    dgx = d[:, 1:, :] - d[:, :-1, :]   # gradient along H (sublane axis)
    dgy = d[:, :, 1:] - d[:, :, :-1]   # gradient along W (lane axis)

    sx = jnp.sum(jnp.abs(dgx))
    sy = jnp.sum(jnp.abs(dgy))

    # Lane-dense output block: sx -> (sublane 0, lane 0), sy -> (sublane 0, lane 1).
    sub = lax.broadcasted_iota(jnp.int32, out_ref.shape, 1)
    lane = lax.broadcasted_iota(jnp.int32, out_ref.shape, 2)
    out_ref[...] = jnp.where(
        (sub == 0) & (lane == 0), sx,
        jnp.where((sub == 0) & (lane == 1), sy, jnp.float32(0.0)),
    )


def _pick_batch_tile(B, img_bytes):
    """Pick the per-step batch tile: ~2 MiB of input, divisor of B if possible."""
    target = int(max(1, min(B, (2 * 1024 * 1024) // max(1, img_bytes))))
    # Prefer a divisor of B (avoids padding == avoids an extra HBM copy of
    # both inputs) as long as it isn't tiny compared to the target tile.
    best_div = 1
    for tb in range(target, 0, -1):
        if B % tb == 0:
            best_div = tb
            break
    if best_div >= max(1, target // 4):
        return best_div, False
    return target, True


def gradient_loss(predict, target):
    """predict, target: (N, C, H, W) arrays. Returns scalar f32 loss."""
    N, C, H, W = predict.shape
    B = N * C
    p = predict.reshape(B, H, W)
    t = target.reshape(B, H, W)

    img_bytes = H * W * p.dtype.itemsize
    TB, needs_pad = _pick_batch_tile(B, img_bytes)
    num_blocks = pl.cdiv(B, TB)
    B_pad = num_blocks * TB
    if needs_pad and B_pad != B:
        # Zero padding of both inputs contributes nothing: d = p - t = 0 there.
        pad = ((0, B_pad - B), (0, 0), (0, 0))
        p = jnp.pad(p, pad)
        t = jnp.pad(t, pad)

    partials = pl.pallas_call(
        _gradient_loss_kernel,
        out_shape=jax.ShapeDtypeStruct((num_blocks, 8, 128), jnp.float32),
        grid=(num_blocks,),
        in_specs=[
            pl.BlockSpec((TB, H, W), lambda b: (b, 0, 0)),
            pl.BlockSpec((TB, H, W), lambda b: (b, 0, 0)),
        ],
        out_specs=pl.BlockSpec((1, 8, 128), lambda b: (b, 0, 0)),
        compiler_params=pltpu.CompilerParams(
            # Each grid step writes its own output block -> fully parallel
            # (both TensorCores participate on v7x).
            dimension_semantics=("parallel",),
        ),
    )(p, t)

    # Only (sublane 0, lanes 0/1) are nonzero; sum over blocks + sublanes.
    totals = jnp.sum(partials, axis=(0, 1))
    nx = jnp.float32(B * (H - 1) * W)   # number of gradx elements
    ny = jnp.float32(B * H * (W - 1))   # number of grady elements
    return totals[0] / nx + totals[1] / ny


def _reference_loss(predict, target):
    p, t = predict.astype(jnp.float32), target.astype(jnp.float32)
    pgx = p[..., 1:, :] - p[..., :-1, :]
    tgx = t[..., 1:, :] - t[..., :-1, :]
    pgy = p[..., 1:] - p[..., :-1]
    tgy = t[..., 1:] - t[..., :-1]
    return jnp.mean(jnp.abs(pgx - tgx)) + jnp.mean(jnp.abs(pgy - tgy))


if __name__ == "__main__":
    key = jax.random.PRNGKey(0)
    k1, k2 = jax.random.split(key)
    N, C, H, W = 2, 4, 16, 16
    predict = jax.random.normal(k1, (N, C, H, W), dtype=jnp.float32)
    target = jax.random.normal(k2, (N, C, H, W), dtype=jnp.float32)

    loss = jax.block_until_ready(gradient_loss(predict, target))
    ref = jax.block_until_ready(_reference_loss(predict, target))

    assert jnp.allclose(loss, ref, rtol=1e-5, atol=1e-5), (loss, ref)
    print("KERNEL_OK")
</pallas_src>

<mosaic_0001>
module attributes {stable_mosaic.version = 11 : i64} {
  func.func @_gradient_loss_kernel(%arg0: i32, %arg1: memref<8x16x16xf32, #tpu.memory_space<vmem>>, %arg2: memref<8x16x16xf32, #tpu.memory_space<vmem>>, %arg3: memref<1x8x128xf32, #tpu.memory_space<vmem>>) attributes {dimension_semantics = [#tpu.dimension_semantics<parallel>], iteration_bounds = array<i64: 1>, scalar_prefetch = 0 : i64, scratch_operands = 0 : i64, tpu.core_type = #tpu.core_type<tc>, window_params = [{transform_indices = @transform_0, window_bounds = array<i64: 8, 16, 16>}, {transform_indices = @transform_1, window_bounds = array<i64: 8, 16, 16>}, {transform_indices = @transform_2, window_bounds = array<i64: 1, 8, 128>}]} {
    %c0 = arith.constant 0 : index
    %c0_0 = arith.constant 0 : index
    %c0_1 = arith.constant 0 : index
    %0 = vector.load %arg1[%c0, %c0_0, %c0_1] : memref<8x16x16xf32, #tpu.memory_space<vmem>>, vector<8x16x16xf32>
    %c0_2 = arith.constant 0 : index
    %c0_3 = arith.constant 0 : index
    %c0_4 = arith.constant 0 : index
    %1 = vector.load %arg2[%c0_2, %c0_3, %c0_4] : memref<8x16x16xf32, #tpu.memory_space<vmem>>, vector<8x16x16xf32>
    %2 = arith.subf %0, %1 : vector<8x16x16xf32>
    %3 = vector.extract_strided_slice %2 {offsets = [0, 1, 0], sizes = [8, 15, 16], strides = [1, 1, 1]} : vector<8x16x16xf32> to vector<8x15x16xf32>
    %4 = vector.extract_strided_slice %2 {offsets = [0, 0, 0], sizes = [8, 15, 16], strides = [1, 1, 1]} : vector<8x16x16xf32> to vector<8x15x16xf32>
    %5 = arith.subf %3, %4 : vector<8x15x16xf32>
    %6 = vector.extract_strided_slice %2 {offsets = [0, 0, 1], sizes = [8, 16, 15], strides = [1, 1, 1]} : vector<8x16x16xf32> to vector<8x16x15xf32>
    %7 = vector.extract_strided_slice %2 {offsets = [0, 0, 0], sizes = [8, 16, 15], strides = [1, 1, 1]} : vector<8x16x16xf32> to vector<8x16x15xf32>
    %8 = arith.subf %6, %7 : vector<8x16x15xf32>
    %9 = math.absf %5 : vector<8x15x16xf32>
    %10 = vector.shape_cast %9 : vector<8x15x16xf32> to vector<1x8x15x16xf32>
    %cst = arith.constant dense<0.000000e+00> : vector<1xf32>
    %11 = vector.multi_reduction <add>, %10, %cst [1, 2, 3] : vector<1x8x15x16xf32> to vector<1xf32>
    %12 = vector.shape_cast %11 : vector<1xf32> to vector<1x1x1x1xf32>
    %13 = vector.extract %12[0, 0, 0, 0] : f32 from vector<1x1x1x1xf32>
    %14 = math.absf %8 : vector<8x16x15xf32>
    %15 = vector.shape_cast %14 : vector<8x16x15xf32> to vector<1x8x16x15xf32>
    %cst_5 = arith.constant dense<0.000000e+00> : vector<1xf32>
    %16 = vector.multi_reduction <add>, %15, %cst_5 [1, 2, 3] : vector<1x8x16x15xf32> to vector<1xf32>
    %17 = vector.shape_cast %16 : vector<1xf32> to vector<1x1x1x1xf32>
    %18 = vector.extract %17[0, 0, 0, 0] : f32 from vector<1x1x1x1xf32>
    %19 = tpu.iota {dimensions = array<i32: 1>} : vector<1x8x128xi32>
    %20 = tpu.iota {dimensions = array<i32: 2>} : vector<1x8x128xi32>
    %c0_i32 = arith.constant 0 : i32
    %21 = vector.broadcast %c0_i32 : i32 to vector<1x8x128xi32>
    %22 = arith.cmpi eq, %19, %21 : vector<1x8x128xi32>
    %c0_i32_6 = arith.constant 0 : i32
    %23 = vector.broadcast %c0_i32_6 : i32 to vector<1x8x128xi32>
    %24 = arith.cmpi eq, %20, %23 : vector<1x8x128xi32>
    %25 = arith.andi %22, %24 : vector<1x8x128xi1>
    %c0_i32_7 = arith.constant 0 : i32
    %26 = vector.broadcast %c0_i32_7 : i32 to vector<1x8x128xi32>
    %27 = arith.cmpi eq, %19, %26 : vector<1x8x128xi32>
    %c1_i32 = arith.constant 1 : i32
    %28 = vector.broadcast %c1_i32 : i32 to vector<1x8x128xi32>
    %29 = arith.cmpi eq, %20, %28 : vector<1x8x128xi32>
    %30 = arith.andi %27, %29 : vector<1x8x128xi1>
    %cst_8 = arith.constant 0.000000e+00 : f32
    %31 = vector.broadcast %18 : f32 to vector<1x8x128xf32>
    %32 = vector.broadcast %cst_8 : f32 to vector<1x8x128xf32>
    %33 = arith.select %30, %31, %32 : vector<1x8x128xi1>, vector<1x8x128xf32>
    %34 = vector.broadcast %13 : f32 to vector<1x8x128xf32>
    %35 = arith.select %25, %34, %33 : vector<1x8x128xi1>, vector<1x8x128xf32>
    %c0_9 = arith.constant 0 : index
    %c0_10 = arith.constant 0 : index
    %c0_11 = arith.constant 0 : index
    %36 = vector.load %arg3[%c0_9, %c0_10, %c0_11] : memref<1x8x128xf32, #tpu.memory_space<vmem>>, vector<1x8x128xf32>
    tpu.vector_store %arg3[%c0_9, %c0_10, %c0_11], %35 {strides = array<i32>} : memref<1x8x128xf32, #tpu.memory_space<vmem>>, vector<1x8x128xf32>,
    return
  }
  func.func @transform_0(%arg0: i32) -> (i32, i32, i32) {
    %c0_i32 = arith.constant 0 : i32
    %c0_i32_0 = arith.constant 0 : i32
    %c0_i32_1 = arith.constant 0 : i32
    return %arg0, %c0_i32, %c0_i32_0 : i32, i32, i32
  }
  func.func @transform_1(%arg0: i32) -> (i32, i32, i32) {
    %c0_i32 = arith.constant 0 : i32
    %c0_i32_0 = arith.constant 0 : i32
    %c0_i32_1 = arith.constant 0 : i32
    return %arg0, %c0_i32, %c0_i32_0 : i32, i32, i32
  }
  func.func @transform_2(%arg0: i32) -> (i32, i32, i32) {
    %c0_i32 = arith.constant 0 : i32
    %c0_i32_0 = arith.constant 0 : i32
    %c0_i32_1 = arith.constant 0 : i32
    return %arg0, %c0_i32, %c0_i32_0 : i32, i32, i32
  }
}

</mosaic_0001>

<llo_original>
// kernel: tpu_custom_call.1
$region0: #{tpu_custom_call.1}
  #allocation0 [shape = 'u32[]', space=smem, size = 0x4, offset = 0x4, fixed_abs, tag = 'smem constant byte address 0x4 - core index']
  #allocation1 [shape = 'u32[72,128]{1,0:T(1,128)}', space=vmem, size = 0x9000, scoped, tag = 'internal scratch']
  %s0 = inlined_call_operand.hbm [shape: f32[8,16,16], index: 0, kind: input, shape index: {}]
  %s1 = inlined_call_operand.hbm [shape: f32[8,16,16], index: 1, kind: input, shape index: {}]
  %s2 = inlined_call_operand.hbm [shape: f32[1,8,128], index: 2, kind: output, shape index: {}]
  %s3 = sld [smem:[#allocation0]]
  $region26: #{tpu_custom_call.1} parent=0
    _
  %s5 = ssub.s32 1, %s3
  %s6 = scalar_select 0, %s5, %s3
  $region1: #{tpu_custom_call.1} parent=0
    #allocation2 [shape = 'u8[65536]{0}', space=vmem, size = 0x10000, scoped, tag = 'input window, operand 0, single buffered']
    #allocation3 [shape = 's32[1]{0}', space=sflag, size = 0x4, scoped, tag = 'scoped memory for tpu_custom_call.1']
    #allocation4 [shape = 's32[1]{0}', space=sflag, size = 0x4, scoped, tag = 'scoped memory for tpu_custom_call.1']
    #allocation5 [shape = 'u8[65536]{0}', space=vmem, size = 0x10000, scoped, tag = 'input window, operand 1, single buffered']
    #allocation6 [shape = 's32[1]{0}', space=sflag, size = 0x4, scoped, tag = 'scoped memory for tpu_custom_call.1']
    #allocation7 [shape = 'u8[4096]{0}', space=vmem, size = 0x1000, scoped, tag = 'output window, operand 0, single buffered']
    %7 = vsyncpa [#allocation3], 0
    %8 = vsyncpa [#allocation6], 0
    %9 = vsyncpa [#allocation4], 0
    // Predicated region
    $region2: #{tpu_custom_call.1} parent=1 // pred_check
      _
    $region3: #{tpu_custom_call.1} parent=1 // pred_check_branch
      %11 = sbr.rel (0) target = $region5
    $region4: #{tpu_custom_call.1} parent=1 // pred_region
      %13 = vsyncadd [#allocation3], 0
      %s14 = sshll.u32 %s0, 4
      %s15 = int_to_ptr.hbm [resolvable:$true] %s14
      %s16 = sshll.u32 [#allocation2], 4
      %s17 = int_to_ptr.vmem [resolvable:$true] %s16
      %22 = dma.hbm_to_vmem [thread:$0]  %s15, 2048, %s17, [#allocation3], 128, 128, 8
    $region5: #{tpu_custom_call.1} parent=1 // pred_fallthru
      _
    // Predicated region
    $region6: #{tpu_custom_call.1} parent=1 // pred_check
      _
    $region7: #{tpu_custom_call.1} parent=1 // pred_check_branch
      %24 = sbr.rel (0) target = $region9
    $region8: #{tpu_custom_call.1} parent=1 // pred_region
      %26 = vsyncadd [#allocation6], 0
      %s27 = sshll.u32 %s1, 4
      %s28 = int_to_ptr.hbm [resolvable:$true] %s27
      %s29 = sshll.u32 [#allocation5], 4
      %s30 = int_to_ptr.vmem [resolvable:$true] %s29
      %35 = dma.hbm_to_vmem [thread:$0]  %s28, 2048, %s30, [#allocation6], 128, 128, 8
    $region9: #{tpu_custom_call.1} parent=1 // pred_fallthru
      _
    // Predicated region
    $region10: #{tpu_custom_call.1} parent=1 // pred_check
      _
    $region11: #{tpu_custom_call.1} parent=1 // pred_check_branch
      %37 = sbr.rel (0) target = $region13
    $region12: #{tpu_custom_call.1} parent=1 // pred_region
      %39 = dma.done [#allocation3], 2048
    $region13: #{tpu_custom_call.1} parent=1 // pred_fallthru
      _
    // Predicated region
    $region14: #{tpu_custom_call.1} parent=1 // pred_check
      _
    $region15: #{tpu_custom_call.1} parent=1 // pred_check_branch
      %41 = sbr.rel (0) target = $region17
    $region16: #{tpu_custom_call.1} parent=1 // pred_region
      %43 = dma.done [#allocation6], 2048
    $region17: #{tpu_custom_call.1} parent=1 // pred_fallthru
      _
    %v44 = vld [vmem:[#allocation2] sm:$0xff]
    %v45 = vld [vmem:[#allocation2 + $0x8] sm:$0xff]
    %v46 = vld [vmem:[#allocation2 + $0x10] sm:$0xff]
    %v47 = vld [vmem:[#allocation2 + $0x18] sm:$0xff]
    %v48 = vld [vmem:[#allocation2 + $0x20] sm:$0xff]
    %v49 = vld [vmem:[#allocation2 + $0x28] sm:$0xff]
    %v50 = vld [vmem:[#allocation2 + $0x30] sm:$0xff]
    %v51 = vld [vmem:[#allocation2 + $0x38] sm:$0xff]
    %v52 = vld [vmem:[#allocation2 + $0x40] sm:$0xff]
    %v53 = vld [vmem:[#allocation2 + $0x48] sm:$0xff]
    %v54 = vld [vmem:[#allocation2 + $0x50] sm:$0xff]
    %v55 = vld [vmem:[#allocation2 + $0x58] sm:$0xff]
    %v56 = vld [vmem:[#allocation2 + $0x60] sm:$0xff]
    %v57 = vld [vmem:[#allocation2 + $0x68] sm:$0xff]
    %v58 = vld [vmem:[#allocation2 + $0x70] sm:$0xff]
    %v59 = vld [vmem:[#allocation2 + $0x78] sm:$0xff]
    %v60 = vld [vmem:[#allocation5] sm:$0xff]
    %v61 = vld [vmem:[#allocation5 + $0x8] sm:$0xff]
    %v62 = vld [vmem:[#allocation5 + $0x10] sm:$0xff]
    %v63 = vld [vmem:[#allocation5 + $0x18] sm:$0xff]
    %v64 = vld [vmem:[#allocation5 + $0x20] sm:$0xff]
    %v65 = vld [vmem:[#allocation5 + $0x28] sm:$0xff]
    %v66 = vld [vmem:[#allocation5 + $0x30] sm:$0xff]
    %v67 = vld [vmem:[#allocation5 + $0x38] sm:$0xff]
    %v68 = vld [vmem:[#allocation5 + $0x40] sm:$0xff]
    %v69 = vld [vmem:[#allocation5 + $0x48] sm:$0xff]
    %v70 = vld [vmem:[#allocation5 + $0x50] sm:$0xff]
    %v71 = vld [vmem:[#allocation5 + $0x58] sm:$0xff]
    %v72 = vld [vmem:[#allocation5 + $0x60] sm:$0xff]
    %v73 = vld [vmem:[#allocation5 + $0x68] sm:$0xff]
    %v74 = vld [vmem:[#allocation5 + $0x70] sm:$0xff]
    %v75 = vld [vmem:[#allocation5 + $0x78] sm:$0xff]
    %v76 = vsub.f32 %v44, %v60
    %v77 = vsub.f32 %v45, %v61
    %v78 = vsub.f32 %v46, %v62
    %v79 = vsub.f32 %v47, %v63
    %v80 = vsub.f32 %v48, %v64
    %v81 = vsub.f32 %v49, %v65
    %v82 = vsub.f32 %v50, %v66
    %v83 = vsub.f32 %v51, %v67
    %v84 = vsub.f32 %v52, %v68
    %v85 = vsub.f32 %v53, %v69
    %v86 = vsub.f32 %v54, %v70
    %v87 = vsub.f32 %v55, %v71
    %v88 = vsub.f32 %v56, %v72
    %v89 = vsub.f32 %v57, %v73
    %v90 = vsub.f32 %v58, %v74
    %v91 = vsub.f32 %v59, %v75
    %vm108 = vcmask 1040384
    %v109 = vrot.slane %v76, 7
    %v110 = vrot.slane %v77, 7
    %v111 = vsel %vm108, %v109, %v110
    %v112 = vrot.slane %v78, 7
    %v113 = vrot.slane %v79, 7
    %v114 = vsel %vm108, %v112, %v113
    %v115 = vrot.slane %v80, 7
    %v116 = vrot.slane %v81, 7
    %v117 = vsel %vm108, %v115, %v116
    %v118 = vrot.slane %v82, 7
    %v119 = vrot.slane %v83, 7
    %v120 = vsel %vm108, %v118, %v119
    %v121 = vrot.slane %v84, 7
    %v122 = vrot.slane %v85, 7
    %v123 = vsel %vm108, %v121, %v122
    %v124 = vrot.slane %v86, 7
    %v125 = vrot.slane %v87, 7
    %v126 = vsel %vm108, %v124, %v125
    %v127 = vrot.slane %v88, 7
    %v128 = vrot.slane %v89, 7
    %v129 = vsel %vm108, %v127, %v128
    %v130 = vrot.slane %v90, 7
    %v131 = vrot.slane %v91, 7
    %v132 = vsel %vm108, %v130, %v131
    %v149 = vsub.f32 %v76, %v109
    %v150 = vsub.f32 %v77, %v111
    %v151 = vsub.f32 %v78, %v112
    %v152 = vsub.f32 %v79, %v114
    %v153 = vsub.f32 %v80, %v115
    %v154 = vsub.f32 %v81, %v117
    %v155 = vsub.f32 %v82, %v118
    %v156 = vsub.f32 %v83, %v120
    %v157 = vsub.f32 %v84, %v121
    %v158 = vsub.f32 %v85, %v123
    %v159 = vsub.f32 %v86, %v124
    %v160 = vsub.f32 %v87, %v126
    %v161 = vsub.f32 %v88, %v127
    %v162 = vsub.f32 %v89, %v129
    %v163 = vsub.f32 %v90, %v130
    %v164 = vsub.f32 %v91, %v132
    %165 = vrot.lane.b32.xlu0 %v76, 1
    %v166 = vpop.permute.xlu0 %165
    %167 = vrot.lane.b32.xlu0 %v77, 1
    %v168 = vpop.permute.xlu0 %167
    %169 = vrot.lane.b32.xlu0 %v78, 1
    %v170 = vpop.permute.xlu0 %169
    %171 = vrot.lane.b32.xlu0 %v79, 1
    %v172 = vpop.permute.xlu0 %171
    %173 = vrot.lane.b32.xlu0 %v80, 1
    %v174 = vpop.permute.xlu0 %173
    %175 = vrot.lane.b32.xlu0 %v81, 1
    %v176 = vpop.permute.xlu0 %175
    %177 = vrot.lane.b32.xlu0 %v82, 1
    %v178 = vpop.permute.xlu0 %177
    %179 = vrot.lane.b32.xlu0 %v83, 1
    %v180 = vpop.permute.xlu0 %179
    %181 = vrot.lane.b32.xlu0 %v84, 1
    %v182 = vpop.permute.xlu0 %181
    %183 = vrot.lane.b32.xlu0 %v85, 1
    %v184 = vpop.permute.xlu0 %183
    %185 = vrot.lane.b32.xlu0 %v86, 1
    %v186 = vpop.permute.xlu0 %185
    %187 = vrot.lane.b32.xlu0 %v87, 1
    %v188 = vpop.permute.xlu0 %187
    %189 = vrot.lane.b32.xlu0 %v88, 1
    %v190 = vpop.permute.xlu0 %189
    %191 = vrot.lane.b32.xlu0 %v89, 1
    %v192 = vpop.permute.xlu0 %191
    %193 = vrot.lane.b32.xlu0 %v90, 1
    %v194 = vpop.permute.xlu0 %193
    %195 = vrot.lane.b32.xlu0 %v91, 1
    %v196 = vpop.permute.xlu0 %195
    %v213 = vsub.f32 %v76, %v166
    %v214 = vsub.f32 %v77, %v168
    %v215 = vsub.f32 %v78, %v170
    %v216 = vsub.f32 %v79, %v172
    %v217 = vsub.f32 %v80, %v174
    %v218 = vsub.f32 %v81, %v176
    %v219 = vsub.f32 %v82, %v178
    %v220 = vsub.f32 %v83, %v180
    %v221 = vsub.f32 %v84, %v182
    %v222 = vsub.f32 %v85, %v184
    %v223 = vsub.f32 %v86, %v186
    %v224 = vsub.f32 %v87, %v188
    %v225 = vsub.f32 %v88, %v190
    %v226 = vsub.f32 %v89, %v192
    %v227 = vsub.f32 %v90, %v194
    %v228 = vsub.f32 %v91, %v196
    %v229 = vand.u32 2147483647, %v149
    %v230 = vand.u32 2147483647, %v150
    %v231 = vand.u32 2147483647, %v151
    %v232 = vand.u32 2147483647, %v152
    %v233 = vand.u32 2147483647, %v153
    %v234 = vand.u32 2147483647, %v154
    %v235 = vand.u32 2147483647, %v155
    %v236 = vand.u32 2147483647, %v156
    %v237 = vand.u32 2147483647, %v157
    %v238 = vand.u32 2147483647, %v158
    %v239 = vand.u32 2147483647, %v159
    %v240 = vand.u32 2147483647, %v160
    %v241 = vand.u32 2147483647, %v161
    %v242 = vand.u32 2147483647, %v162
    %v243 = vand.u32 2147483647, %v163
    %v244 = vand.u32 2147483647, %v164
    %vm261 = vcmask 1046528
    %v262 = vrot.slane %v229, 1
    %v263 = vrot.slane %v230, 1
    %v264 = vsel %vm261, %v262, %v263
    %v265 = vrot.slane %v231, 1
    %v266 = vrot.slane %v232, 1
    %v267 = vsel %vm261, %v265, %v266
    %v268 = vrot.slane %v233, 1
    %v269 = vrot.slane %v234, 1
    %v270 = vsel %vm261, %v268, %v269
    %v271 = vrot.slane %v235, 1
    %v272 = vrot.slane %v236, 1
    %v273 = vsel %vm261, %v271, %v272
    %v274 = vrot.slane %v237, 1
    %v275 = vrot.slane %v238, 1
    %v276 = vsel %vm261, %v274, %v275
    %v277 = vrot.slane %v239, 1
    %v278 = vrot.slane %v240, 1
    %v279 = vsel %vm261, %v277, %v278
    %v280 = vrot.slane %v241, 1
    %v281 = vrot.slane %v242, 1
    %v282 = vsel %vm261, %v280, %v281
    %v283 = vrot.slane %v243, 1
    %v284 = vrot.slane %v244, 1
    %v285 = vsel %vm261, %v283, %v284
    %vm302 = vcmask 130048
    %v303 = vsel %vm302, %v264, 0.0
    %vm304 = vcmask 129024
    %v305 = vsel %vm304, %v263, 0.0
    %v306 = vadd.f32 %v303, %v305
    %v307 = vsel %vm302, %v267, 0.0
    %v308 = vadd.f32 %v306, %v307
    %v309 = vsel %vm304, %v266, 0.0
    %v310 = vadd.f32 %v308, %v309
    %v311 = vsel %vm302, %v270, 0.0
    %v312 = vadd.f32 %v310, %v311
    %v313 = vsel %vm304, %v269, 0.0
    %v314 = vadd.f32 %v312, %v313
    %v315 = vsel %vm302, %v273, 0.0
    %v316 = vadd.f32 %v314, %v315
    %v317 = vsel %vm304, %v272, 0.0
    %v318 = vadd.f32 %v316, %v317
    %v319 = vsel %vm302, %v276, 0.0
    %v320 = vadd.f32 %v318, %v319
    %v321 = vsel %vm304, %v275, 0.0
    %v322 = vadd.f32 %v320, %v321
    %v323 = vsel %vm302, %v279, 0.0
    %v324 = vadd.f32 %v322, %v323
    %v325 = vsel %vm304, %v278, 0.0
    %v326 = vadd.f32 %v324, %v325
    %v327 = vsel %vm302, %v282, 0.0
    %v328 = vadd.f32 %v326, %v327
    %v329 = vsel %vm304, %v281, 0.0
    %v330 = vadd.f32 %v328, %v329
    %v331 = vsel %vm302, %v285, 0.0
    %v332 = vadd.f32 %v330, %v331
    %v333 = vsel %vm304, %v284, 0.0
    %v334 = vadd.f32 %v332, %v333
    %335 = vadd.xlane.f32.xlu0 %v334
    %v336 = vpop.xlane.xlu0 %335
    %v337 = vrot.slane %v336, 4
    %v338 = vadd.f32 %v336, %v337
    %v339 = vrot.slane %v338, 2
    %v340 = vadd.f32 %v338, %v339
    %v341 = vrot.slane %v340, 1
    %v342 = vadd.f32 %v340, %v341
    %s343 = vtos %v342
    %v344 = vand.u32 2147483647, %v213
    %v345 = vand.u32 2147483647, %v214
    %v346 = vand.u32 2147483647, %v215
    %v347 = vand.u32 2147483647, %v216
    %v348 = vand.u32 2147483647, %v217
    %v349 = vand.u32 2147483647, %v218
    %v350 = vand.u32 2147483647, %v219
    %v351 = vand.u32 2147483647, %v220
    %v352 = vand.u32 2147483647, %v221
    %v353 = vand.u32 2147483647, %v222
    %v354 = vand.u32 2147483647, %v223
    %v355 = vand.u32 2147483647, %v224
    %v356 = vand.u32 2147483647, %v225
    %v357 = vand.u32 2147483647, %v226
    %v358 = vand.u32 2147483647, %v227
    %v359 = vand.u32 2147483647, %v228
    %376 = vrot.lane.b32.xlu0 %v344, 127
    %v377 = vpop.permute.xlu0 %376
    %378 = vrot.lane.b32.xlu0 %v345, 127
    %v379 = vpop.permute.xlu0 %378
    %380 = vrot.lane.b32.xlu0 %v346, 127
    %v381 = vpop.permute.xlu0 %380
    %382 = vrot.lane.b32.xlu0 %v347, 127
    %v383 = vpop.permute.xlu0 %382
    %384 = vrot.lane.b32.xlu0 %v348, 127
    %v385 = vpop.permute.xlu0 %384
    %386 = vrot.lane.b32.xlu0 %v349, 127
    %v387 = vpop.permute.xlu0 %386
    %388 = vrot.lane.b32.xlu0 %v350, 127
    %v389 = vpop.permute.xlu0 %388
    %390 = vrot.lane.b32.xlu0 %v351, 127
    %v391 = vpop.permute.xlu0 %390
    %392 = vrot.lane.b32.xlu0 %v352, 127
    %v393 = vpop.permute.xlu0 %392
    %394 = vrot.lane.b32.xlu0 %v353, 127
    %v395 = vpop.permute.xlu0 %394
    %396 = vrot.lane.b32.xlu0 %v354, 127
    %v397 = vpop.permute.xlu0 %396
    %398 = vrot.lane.b32.xlu0 %v355, 127
    %v399 = vpop.permute.xlu0 %398
    %400 = vrot.lane.b32.xlu0 %v356, 127
    %v401 = vpop.permute.xlu0 %400
    %402 = vrot.lane.b32.xlu0 %v357, 127
    %v403 = vpop.permute.xlu0 %402
    %404 = vrot.lane.b32.xlu0 %v358, 127
    %v405 = vpop.permute.xlu0 %404
    %406 = vrot.lane.b32.xlu0 %v359, 127
    %v407 = vpop.permute.xlu0 %406
    %vm424 = vcmask 121856
    %v425 = vsel %vm424, %v377, 0.0
    %v426 = vsel %vm424, %v379, 0.0
    %v427 = vadd.f32 %v425, %v426
    %v428 = vsel %vm424, %v381, 0.0
    %v429 = vadd.f32 %v427, %v428
    %v430 = vsel %vm424, %v383, 0.0
    %v431 = vadd.f32 %v429, %v430
    %v432 = vsel %vm424, %v385, 0.0
    %v433 = vadd.f32 %v431, %v432
    %v434 = vsel %vm424, %v387, 0.0
    %v435 = vadd.f32 %v433, %v434
    %v436 = vsel %vm424, %v389, 0.0
    %v437 = vadd.f32 %v435, %v436
    %v438 = vsel %vm424, %v391, 0.0
    %v439 = vadd.f32 %v437, %v438
    %v440 = vsel %vm424, %v393, 0.0
    %v441 = vadd.f32 %v439, %v440
    %v442 = vsel %vm424, %v395, 0.0
    %v443 = vadd.f32 %v441, %v442
    %v444 = vsel %vm424, %v397, 0.0
    %v445 = vadd.f32 %v443, %v444
    %v446 = vsel %vm424, %v399, 0.0
    %v447 = vadd.f32 %v445, %v446
    %v448 = vsel %vm424, %v401, 0.0
    %v449 = vadd.f32 %v447, %v448
    %v450 = vsel %vm424, %v403, 0.0
    %v451 = vadd.f32 %v449, %v450
    %v452 = vsel %vm424, %v405, 0.0
    %v453 = vadd.f32 %v451, %v452
    %v454 = vsel %vm424, %v407, 0.0
    %v455 = vadd.f32 %v453, %v454
    %456 = vadd.xlane.f32.xlu0 %v455
    %v457 = vpop.xlane.xlu0 %456
    %v458 = vrot.slane %v457, 4
    %v459 = vadd.f32 %v457, %v458
    %v460 = vrot.slane %v459, 2
    %v461 = vadd.f32 %v459, %v460
    %v462 = vrot.slane %v461, 1
    %v463 = vadd.f32 %v461, %v462
    %s464 = vtos %v463
    %v465 = vlaneseq
    %v466 = vshrl.u32 %v465, 7
    %v467 = vlaneseq
    %v468 = vand.u32 %v467, 127
    %vm469 = vcmp.eq.s32.totalorder %v466, 0
    %vm470 = vcmp.eq.s32.totalorder %v468, 0
    %vm471 = vmand %vm469, %vm470
    %vm472 = vcmp.eq.s32.totalorder %v468, 1
    %vm473 = vmand %vm469, %vm472
    %v474 = vstv %s464
    %v475 = vsel %vm473, %v474, 0.0
    %v476 = vstv %s343
    %v477 = vsel %vm471, %v476, %v475
    %478 = vst [vmem:[#allocation7] sm:$0xff] %v477
    // Predicated region
    $region18: #{tpu_custom_call.1} parent=1 // pred_check
      _
    $region19: #{tpu_custom_call.1} parent=1 // pred_check_branch
      %480 = sbr.rel (0) target = $region21
    $region20: #{tpu_custom_call.1} parent=1 // pred_region
      %482 = vsyncadd [#allocation4], 0
      %s484 = sshll.u32 [#allocation7], 4
      %s485 = int_to_ptr.vmem [resolvable:$true] %s484
      %s486 = sshll.u32 %s2, 4
      %s487 = int_to_ptr.hbm [resolvable:$true] %s486
      %489 = dma.vmem_to_hbm [thread:$0]  %s485, 128, %s487, [#allocation4]
    $region21: #{tpu_custom_call.1} parent=1 // pred_fallthru
      _
    // Predicated region
    $region22: #{tpu_custom_call.1} parent=1 // pred_check
      _
    $region23: #{tpu_custom_call.1} parent=1 // pred_check_branch
      %491 = sbr.rel (0) target = $region25
    $region24: #{tpu_custom_call.1} parent=1 // pred_region
      %493 = dma.done [#allocation4], 128
    $region25: #{tpu_custom_call.1} parent=1 // pred_fallthru
      _
    %494 = vsyncpa [#allocation3], 1
    %495 = vsyncpa [#allocation6], 1
    %496 = vsyncpa [#allocation4], 1

</llo_original>
